<compile_context>
chip_gen: v7x
topology: tpu7x:2x2x1
jax: 0.10.0
libtpu: 0.0.40
codegen_flags: <defaults>
</compile_context>

<pallas_src>
import jax
import jax.numpy as jnp
from jax.experimental import pallas as pl
from jax.experimental.pallas import tpu as pltpu


def _mlp_kernel(s_ref, a_ref,
                w1s_ref, w1a_ref, b1_ref,
                w2_ref, b2_ref,
                w3_ref, b3_ref,
                w4_ref, b4_ref,
                o_ref):
    s = s_ref[...]                       # (TILE_B, state_dim) f32 (reused for residual)
    a = a_ref[...]                       # (TILE_B, act_dim)  f32

    # Layer 1: fused "concat matmul" as two MXU pushes, bf16 in / f32 acc.
    h = (jnp.dot(s.astype(jnp.bfloat16), w1s_ref[...],
                 preferred_element_type=jnp.float32)
         + jnp.dot(a.astype(jnp.bfloat16), w1a_ref[...],
                   preferred_element_type=jnp.float32)
         + b1_ref[...])
    h = jnp.maximum(h, 0.0)

    # Layer 2
    h = jnp.dot(h.astype(jnp.bfloat16), w2_ref[...],
                preferred_element_type=jnp.float32) + b2_ref[...]
    h = jnp.maximum(h, 0.0)

    # Layer 3
    h = jnp.dot(h.astype(jnp.bfloat16), w3_ref[...],
                preferred_element_type=jnp.float32) + b3_ref[...]
    h = jnp.maximum(h, 0.0)

    # Output layer + residual connection (all f32).
    mean = jnp.dot(h.astype(jnp.bfloat16), w4_ref[...],
                   preferred_element_type=jnp.float32) + b4_ref[...]

    o_ref[...] = (mean + s).astype(o_ref.dtype)


def linear_forward(states, actions, params, *, max_tile_b=512):
    """Pallas forward pass. states: (B, state_dim), actions: (B, act_dim)."""
    w1, b1, w2, b2, w3, b3, w4, b4 = params
    states = states.astype(jnp.float32)
    actions = actions.astype(jnp.float32)

    B, state_dim = states.shape
    act_dim = actions.shape[-1]
    n_hid = w1.shape[1]

    # Split W1 so that concat([s, a]) @ W1 == s @ W1_s + a @ W1_a.
    # (In a training loop this split/cast would be done once, not per call.)
    w1_s = w1[:state_dim, :].astype(jnp.bfloat16)
    w1_a = w1[state_dim:, :].astype(jnp.bfloat16)
    w2b = w2.astype(jnp.bfloat16)
    w3b = w3.astype(jnp.bfloat16)
    w4b = w4.astype(jnp.bfloat16)

    # Batch tile: full B when small (valid block even if B % 8 != 0 since it
    # equals the full dim); otherwise a large 8-aligned tile to amortize the
    # per-step overhead and keep DMA pipelined. VMEM use is tiny here (weights
    # are n_hid^2 bf16), so no explicit vmem_limit_bytes is needed.
    tile_b = B if B <= max_tile_b else max_tile_b
    grid = (pl.cdiv(B, tile_b),)

    def act_spec(cols):
        return pl.BlockSpec((tile_b, cols), lambda i: (i, 0))

    def const_spec(shape):
        return pl.BlockSpec(shape, lambda i: (0, 0))

    return pl.pallas_call(
        _mlp_kernel,
        out_shape=jax.ShapeDtypeStruct((B, state_dim), jnp.float32),
        grid=grid,
        in_specs=[
            act_spec(state_dim),              # states (batch-tiled)
            act_spec(act_dim),                # actions (batch-tiled)
            const_spec((state_dim, n_hid)),   # W1_states (resident)
            const_spec((act_dim, n_hid)),     # W1_actions
            const_spec((1, n_hid)),           # b1
            const_spec((n_hid, n_hid)),       # W2
            const_spec((1, n_hid)),           # b2
            const_spec((n_hid, n_hid)),       # W3
            const_spec((1, n_hid)),           # b3
            const_spec((n_hid, state_dim)),   # W4
            const_spec((1, state_dim)),       # b4
        ],
        out_specs=act_spec(state_dim),
        compiler_params=pltpu.CompilerParams(
            dimension_semantics=("parallel",)),
    )(states, actions, w1_s, w1_a, b1, w2b, b2, w3b, b3, w4b, b4)


def init_params(key, state_dim, act_dim, n_hid):
    """Deterministic init mirroring nn.Linear default (uniform +-1/sqrt(fan_in)).
    Weights stored as (in, out)."""
    dims = [(state_dim + act_dim, n_hid), (n_hid, n_hid),
            (n_hid, n_hid), (n_hid, state_dim)]
    params = []
    for i, (fan_in, fan_out) in enumerate(dims):
        kw, kb = jax.random.split(jax.random.fold_in(key, i))
        bound = 1.0 / (fan_in ** 0.5)
        w = jax.random.uniform(kw, (fan_in, fan_out), jnp.float32, -bound, bound)
        b = jax.random.uniform(kb, (1, fan_out), jnp.float32, -bound, bound)
        params += [w, b]
    return tuple(params)


def reference_forward(states, actions, params):
    """Pure-JAX f32 reference (mirrors the PyTorch module)."""
    w1, b1, w2, b2, w3, b3, w4, b4 = params
    x = jnp.concatenate([states, actions], axis=-1)
    h = jnp.maximum(x @ w1 + b1, 0.0)
    h = jnp.maximum(h @ w2 + b2, 0.0)
    h = jnp.maximum(h @ w3 + b3, 0.0)
    return h @ w4 + b4 + states


if __name__ == "__main__":
    key = jax.random.PRNGKey(0)
    B, state_dim, act_dim, n_hid = 32, 16, 8, 32

    k_s, k_a, k_p = jax.random.split(key, 3)
    states = jax.random.normal(k_s, (B, state_dim), jnp.float32)
    actions = jax.random.normal(k_a, (B, act_dim), jnp.float32)
    params = init_params(k_p, state_dim, act_dim, n_hid)

    out = linear_forward(states, actions, params)
    out = jax.block_until_ready(out)

    ref = reference_forward(states, actions, params)
    assert out.shape == (B, state_dim)
    # bf16 MXU inputs -> loosened tolerance vs. the f32 reference.
    assert jnp.allclose(out, ref, atol=5e-2, rtol=5e-2), (
        float(jnp.max(jnp.abs(out - ref))))

    print("KERNEL_OK")
</pallas_src>

<mosaic_0001>
module attributes {stable_mosaic.version = 11 : i64} {
  func.func @_mlp_kernel(%arg0: i32, %arg1: memref<32x16xf32, #tpu.memory_space<vmem>>, %arg2: memref<32x8xf32, #tpu.memory_space<vmem>>, %arg3: memref<16x32xbf16, #tpu.memory_space<vmem>>, %arg4: memref<8x32xbf16, #tpu.memory_space<vmem>>, %arg5: memref<1x32xf32, #tpu.memory_space<vmem>>, %arg6: memref<32x32xbf16, #tpu.memory_space<vmem>>, %arg7: memref<1x32xf32, #tpu.memory_space<vmem>>, %arg8: memref<32x32xbf16, #tpu.memory_space<vmem>>, %arg9: memref<1x32xf32, #tpu.memory_space<vmem>>, %arg10: memref<32x16xbf16, #tpu.memory_space<vmem>>, %arg11: memref<1x16xf32, #tpu.memory_space<vmem>>, %arg12: memref<32x16xf32, #tpu.memory_space<vmem>>) attributes {dimension_semantics = [#tpu.dimension_semantics<parallel>], iteration_bounds = array<i64: 1>, scalar_prefetch = 0 : i64, scratch_operands = 0 : i64, tpu.core_type = #tpu.core_type<tc>, window_params = [{transform_indices = @transform_0, window_bounds = array<i64: 32, 16>}, {transform_indices = @transform_1, window_bounds = array<i64: 32, 8>}, {pipeline_mode = #tpu.pipeline_mode<synchronous>, transform_indices = @transform_2, window_bounds = array<i64: 16, 32>}, {pipeline_mode = #tpu.pipeline_mode<synchronous>, transform_indices = @transform_3, window_bounds = array<i64: 8, 32>}, {pipeline_mode = #tpu.pipeline_mode<synchronous>, transform_indices = @transform_4, window_bounds = array<i64: 1, 32>}, {pipeline_mode = #tpu.pipeline_mode<synchronous>, transform_indices = @transform_5, window_bounds = array<i64: 32, 32>}, {pipeline_mode = #tpu.pipeline_mode<synchronous>, transform_indices = @transform_6, window_bounds = array<i64: 1, 32>}, {pipeline_mode = #tpu.pipeline_mode<synchronous>, transform_indices = @transform_7, window_bounds = array<i64: 32, 32>}, {pipeline_mode = #tpu.pipeline_mode<synchronous>, transform_indices = @transform_8, window_bounds = array<i64: 1, 32>}, {pipeline_mode = #tpu.pipeline_mode<synchronous>, transform_indices = @transform_9, window_bounds = array<i64: 32, 16>}, {pipeline_mode = #tpu.pipeline_mode<synchronous>, transform_indices = @transform_10, window_bounds = array<i64: 1, 16>}, {transform_indices = @transform_11, window_bounds = array<i64: 32, 16>}]} {
    %c0 = arith.constant 0 : index
    %c0_0 = arith.constant 0 : index
    %0 = vector.load %arg1[%c0, %c0_0] : memref<32x16xf32, #tpu.memory_space<vmem>>, vector<32x16xf32>
    %c0_1 = arith.constant 0 : index
    %c0_2 = arith.constant 0 : index
    %1 = vector.load %arg2[%c0_1, %c0_2] : memref<32x8xf32, #tpu.memory_space<vmem>>, vector<32x8xf32>
    %2 = arith.truncf %0 : vector<32x16xf32> to vector<32x16xbf16>
    %c0_3 = arith.constant 0 : index
    %c0_4 = arith.constant 0 : index
    %3 = vector.load %arg3[%c0_3, %c0_4] : memref<16x32xbf16, #tpu.memory_space<vmem>>, vector<16x32xbf16>
    %cst = arith.constant dense<0.000000e+00> : vector<32x32xf32>
    %4 = tpu.matmul %2, %3, %cst {dimension_numbers = #tpu.dot_dimension_numbers<[1], [0], [0], [1], [0, 0, 1, 1], [], []>} : vector<32x16xbf16>, vector<16x32xbf16>, vector<32x32xf32> -> vector<32x32xf32>
    %5 = arith.truncf %1 : vector<32x8xf32> to vector<32x8xbf16>
    %c0_5 = arith.constant 0 : index
    %c0_6 = arith.constant 0 : index
    %6 = vector.load %arg4[%c0_5, %c0_6] : memref<8x32xbf16, #tpu.memory_space<vmem>>, vector<8x32xbf16>
    %cst_7 = arith.constant dense<0.000000e+00> : vector<32x32xf32>
    %7 = tpu.matmul %5, %6, %cst_7 {dimension_numbers = #tpu.dot_dimension_numbers<[1], [0], [0], [1], [0, 0, 1, 1], [], []>} : vector<32x8xbf16>, vector<8x32xbf16>, vector<32x32xf32> -> vector<32x32xf32>
    %8 = arith.addf %4, %7 : vector<32x32xf32>
    %c0_8 = arith.constant 0 : index
    %c0_9 = arith.constant 0 : index
    %9 = vector.load %arg5[%c0_8, %c0_9] : memref<1x32xf32, #tpu.memory_space<vmem>>, vector<1x32xf32>
    %10 = vector.broadcast %9 : vector<1x32xf32> to vector<32x32xf32>
    %11 = arith.addf %8, %10 : vector<32x32xf32>
    %cst_10 = arith.constant 0.000000e+00 : f32
    %12 = vector.broadcast %cst_10 : f32 to vector<32x32xf32>
    %13 = arith.maximumf %11, %12 : vector<32x32xf32>
    %14 = arith.truncf %13 : vector<32x32xf32> to vector<32x32xbf16>
    %c0_11 = arith.constant 0 : index
    %c0_12 = arith.constant 0 : index
    %15 = vector.load %arg6[%c0_11, %c0_12] : memref<32x32xbf16, #tpu.memory_space<vmem>>, vector<32x32xbf16>
    %cst_13 = arith.constant dense<0.000000e+00> : vector<32x32xf32>
    %16 = tpu.matmul %14, %15, %cst_13 {dimension_numbers = #tpu.dot_dimension_numbers<[1], [0], [0], [1], [0, 0, 1, 1], [], []>} : vector<32x32xbf16>, vector<32x32xbf16>, vector<32x32xf32> -> vector<32x32xf32>
    %c0_14 = arith.constant 0 : index
    %c0_15 = arith.constant 0 : index
    %17 = vector.load %arg7[%c0_14, %c0_15] : memref<1x32xf32, #tpu.memory_space<vmem>>, vector<1x32xf32>
    %18 = vector.broadcast %17 : vector<1x32xf32> to vector<32x32xf32>
    %19 = arith.addf %16, %18 : vector<32x32xf32>
    %cst_16 = arith.constant 0.000000e+00 : f32
    %20 = vector.broadcast %cst_16 : f32 to vector<32x32xf32>
    %21 = arith.maximumf %19, %20 : vector<32x32xf32>
    %22 = arith.truncf %21 : vector<32x32xf32> to vector<32x32xbf16>
    %c0_17 = arith.constant 0 : index
    %c0_18 = arith.constant 0 : index
    %23 = vector.load %arg8[%c0_17, %c0_18] : memref<32x32xbf16, #tpu.memory_space<vmem>>, vector<32x32xbf16>
    %cst_19 = arith.constant dense<0.000000e+00> : vector<32x32xf32>
    %24 = tpu.matmul %22, %23, %cst_19 {dimension_numbers = #tpu.dot_dimension_numbers<[1], [0], [0], [1], [0, 0, 1, 1], [], []>} : vector<32x32xbf16>, vector<32x32xbf16>, vector<32x32xf32> -> vector<32x32xf32>
    %c0_20 = arith.constant 0 : index
    %c0_21 = arith.constant 0 : index
    %25 = vector.load %arg9[%c0_20, %c0_21] : memref<1x32xf32, #tpu.memory_space<vmem>>, vector<1x32xf32>
    %26 = vector.broadcast %25 : vector<1x32xf32> to vector<32x32xf32>
    %27 = arith.addf %24, %26 : vector<32x32xf32>
    %cst_22 = arith.constant 0.000000e+00 : f32
    %28 = vector.broadcast %cst_22 : f32 to vector<32x32xf32>
    %29 = arith.maximumf %27, %28 : vector<32x32xf32>
    %30 = arith.truncf %29 : vector<32x32xf32> to vector<32x32xbf16>
    %c0_23 = arith.constant 0 : index
    %c0_24 = arith.constant 0 : index
    %31 = vector.load %arg10[%c0_23, %c0_24] : memref<32x16xbf16, #tpu.memory_space<vmem>>, vector<32x16xbf16>
    %cst_25 = arith.constant dense<0.000000e+00> : vector<32x16xf32>
    %32 = tpu.matmul %30, %31, %cst_25 {dimension_numbers = #tpu.dot_dimension_numbers<[1], [0], [0], [1], [0, 0, 1, 1], [], []>} : vector<32x32xbf16>, vector<32x16xbf16>, vector<32x16xf32> -> vector<32x16xf32>
    %c0_26 = arith.constant 0 : index
    %c0_27 = arith.constant 0 : index
    %33 = vector.load %arg11[%c0_26, %c0_27] : memref<1x16xf32, #tpu.memory_space<vmem>>, vector<1x16xf32>
    %34 = vector.broadcast %33 : vector<1x16xf32> to vector<32x16xf32>
    %35 = arith.addf %32, %34 : vector<32x16xf32>
    %36 = arith.addf %35, %0 : vector<32x16xf32>
    %c0_28 = arith.constant 0 : index
    %c0_29 = arith.constant 0 : index
    %37 = vector.load %arg12[%c0_28, %c0_29] : memref<32x16xf32, #tpu.memory_space<vmem>>, vector<32x16xf32>
    tpu.vector_store %arg12[%c0_28, %c0_29], %36 {strides = array<i32>} : memref<32x16xf32, #tpu.memory_space<vmem>>, vector<32x16xf32>,
    return
  }
  func.func @transform_0(%arg0: i32) -> (i32, i32) {
    %c0_i32 = arith.constant 0 : i32
    %c0_i32_0 = arith.constant 0 : i32
    return %arg0, %c0_i32 : i32, i32
  }
  func.func @transform_1(%arg0: i32) -> (i32, i32) {
    %c0_i32 = arith.constant 0 : i32
    %c0_i32_0 = arith.constant 0 : i32
    return %arg0, %c0_i32 : i32, i32
  }
  func.func @transform_2(%arg0: i32) -> (i32, i32) {
    %c0_i32 = arith.constant 0 : i32
    %c0_i32_0 = arith.constant 0 : i32
    %c0_i32_1 = arith.constant 0 : i32
    return %c0_i32, %c0_i32_0 : i32, i32
  }
  func.func @transform_3(%arg0: i32) -> (i32, i32) {
    %c0_i32 = arith.constant 0 : i32
    %c0_i32_0 = arith.constant 0 : i32
    %c0_i32_1 = arith.constant 0 : i32
    return %c0_i32, %c0_i32_0 : i32, i32
  }
  func.func @transform_4(%arg0: i32) -> (i32, i32) {
    %c0_i32 = arith.constant 0 : i32
    %c0_i32_0 = arith.constant 0 : i32
    %c0_i32_1 = arith.constant 0 : i32
    return %c0_i32, %c0_i32_0 : i32, i32
  }
  func.func @transform_5(%arg0: i32) -> (i32, i32) {
    %c0_i32 = arith.constant 0 : i32
    %c0_i32_0 = arith.constant 0 : i32
    %c0_i32_1 = arith.constant 0 : i32
    return %c0_i32, %c0_i32_0 : i32, i32
  }
  func.func @transform_6(%arg0: i32) -> (i32, i32) {
    %c0_i32 = arith.constant 0 : i32
    %c0_i32_0 = arith.constant 0 : i32
    %c0_i32_1 = arith.constant 0 : i32
    return %c0_i32, %c0_i32_0 : i32, i32
  }
  func.func @transform_7(%arg0: i32) -> (i32, i32) {
    %c0_i32 = arith.constant 0 : i32
    %c0_i32_0 = arith.constant 0 : i32
    %c0_i32_1 = arith.constant 0 : i32
    return %c0_i32, %c0_i32_0 : i32, i32
  }
  func.func @transform_8(%arg0: i32) -> (i32, i32) {
    %c0_i32 = arith.constant 0 : i32
    %c0_i32_0 = arith.constant 0 : i32
    %c0_i32_1 = arith.constant 0 : i32
    return %c0_i32, %c0_i32_0 : i32, i32
  }
  func.func @transform_9(%arg0: i32) -> (i32, i32) {
    %c0_i32 = arith.constant 0 : i32
    %c0_i32_0 = arith.constant 0 : i32
    %c0_i32_1 = arith.constant 0 : i32
    return %c0_i32, %c0_i32_0 : i32, i32
  }
  func.func @transform_10(%arg0: i32) -> (i32, i32) {
    %c0_i32 = arith.constant 0 : i32
    %c0_i32_0 = arith.constant 0 : i32
    %c0_i32_1 = arith.constant 0 : i32
    return %c0_i32, %c0_i32_0 : i32, i32
  }
  func.func @transform_11(%arg0: i32) -> (i32, i32) {
    %c0_i32 = arith.constant 0 : i32
    %c0_i32_0 = arith.constant 0 : i32
    return %arg0, %c0_i32 : i32, i32
  }
}

</mosaic_0001>

<llo_original>
// kernel: tpu_custom_call.1
$region0: #{tpu_custom_call.1}
  #allocation0 [shape = 'u32[]', space=smem, size = 0x4, offset = 0x4, fixed_abs, tag = 'smem constant byte address 0x4 - core index']
  #allocation1 [shape = 'u32[144,128]{1,0:T(1,128)}', space=vmem, size = 0x12000, scoped, tag = 'internal scratch']
  %s0 = inlined_call_operand.vmem [shape: f32[32,16], index: 0, kind: input, shape index: {}]
  %s1 = inlined_call_operand.vmem [shape: f32[32,8], index: 1, kind: input, shape index: {}]
  %s2 = inlined_call_operand.vmem [shape: bf16[16,32], index: 2, kind: input, shape index: {}]
  %s3 = inlined_call_operand.vmem [shape: bf16[8,32], index: 3, kind: input, shape index: {}]
  %s4 = inlined_call_operand.vmem [shape: f32[1,32], index: 4, kind: input, shape index: {}]
  %s5 = inlined_call_operand.vmem [shape: bf16[32,32], index: 5, kind: input, shape index: {}]
  %s6 = inlined_call_operand.vmem [shape: f32[1,32], index: 6, kind: input, shape index: {}]
  %s7 = inlined_call_operand.vmem [shape: bf16[32,32], index: 7, kind: input, shape index: {}]
  %s8 = inlined_call_operand.vmem [shape: f32[1,32], index: 8, kind: input, shape index: {}]
  %s9 = inlined_call_operand.vmem [shape: bf16[32,16], index: 9, kind: input, shape index: {}]
  %s10 = inlined_call_operand.vmem [shape: f32[1,16], index: 10, kind: input, shape index: {}]
  %s11 = inlined_call_operand.vmem [shape: f32[32,16], index: 11, kind: output, shape index: {}]
  %s12 = sld [smem:[#allocation0]]
  $region54: #{tpu_custom_call.1} parent=0
    _
  %s14 = ssub.s32 1, %s12
  %s15 = scalar_select 0, %s14, %s12
  // Predicated region
  $region2: #{tpu_custom_call.1} parent=0 // pred_check
    _
  $region3: #{tpu_custom_call.1} parent=0 // pred_check_branch
    %17 = sbr.rel (0) target = $region5
  $region4: #{tpu_custom_call.1} parent=0 // pred_region
    _
  $region5: #{tpu_custom_call.1} parent=0 // pred_fallthru
    _
  // Predicated region
  $region6: #{tpu_custom_call.1} parent=0 // pred_check
    _
  $region7: #{tpu_custom_call.1} parent=0 // pred_check_branch
    %19 = sbr.rel (0) target = $region9
  $region8: #{tpu_custom_call.1} parent=0 // pred_region
    _
  $region9: #{tpu_custom_call.1} parent=0 // pred_fallthru
    _
  // Predicated region
  $region10: #{tpu_custom_call.1} parent=0 // pred_check
    _
  $region11: #{tpu_custom_call.1} parent=0 // pred_check_branch
    %21 = sbr.rel (0) target = $region13
  $region12: #{tpu_custom_call.1} parent=0 // pred_region
    _
  $region13: #{tpu_custom_call.1} parent=0 // pred_fallthru
    _
  // Predicated region
  $region14: #{tpu_custom_call.1} parent=0 // pred_check
    _
  $region15: #{tpu_custom_call.1} parent=0 // pred_check_branch
    %23 = sbr.rel (0) target = $region17
  $region16: #{tpu_custom_call.1} parent=0 // pred_region
    _
  $region17: #{tpu_custom_call.1} parent=0 // pred_fallthru
    _
  // Predicated region
  $region18: #{tpu_custom_call.1} parent=0 // pred_check
    _
  $region19: #{tpu_custom_call.1} parent=0 // pred_check_branch
    %25 = sbr.rel (0) target = $region21
  $region20: #{tpu_custom_call.1} parent=0 // pred_region
    _
  $region21: #{tpu_custom_call.1} parent=0 // pred_fallthru
    _
  // Predicated region
  $region22: #{tpu_custom_call.1} parent=0 // pred_check
    _
  $region23: #{tpu_custom_call.1} parent=0 // pred_check_branch
    %27 = sbr.rel (0) target = $region25
  $region24: #{tpu_custom_call.1} parent=0 // pred_region
    _
  $region25: #{tpu_custom_call.1} parent=0 // pred_fallthru
    _
  // Predicated region
  $region26: #{tpu_custom_call.1} parent=0 // pred_check
    _
  $region27: #{tpu_custom_call.1} parent=0 // pred_check_branch
    %29 = sbr.rel (0) target = $region29
  $region28: #{tpu_custom_call.1} parent=0 // pred_region
    _
  $region29: #{tpu_custom_call.1} parent=0 // pred_fallthru
    _
  // Predicated region
  $region30: #{tpu_custom_call.1} parent=0 // pred_check
    _
  $region31: #{tpu_custom_call.1} parent=0 // pred_check_branch
    %31 = sbr.rel (0) target = $region33
  $region32: #{tpu_custom_call.1} parent=0 // pred_region
    _
  $region33: #{tpu_custom_call.1} parent=0 // pred_fallthru
    _
  // Predicated region
  $region34: #{tpu_custom_call.1} parent=0 // pred_check
    _
  $region35: #{tpu_custom_call.1} parent=0 // pred_check_branch
    %33 = sbr.rel (0) target = $region37
  $region36: #{tpu_custom_call.1} parent=0 // pred_region
    _
  $region37: #{tpu_custom_call.1} parent=0 // pred_fallthru
    _
  // Predicated region
  $region38: #{tpu_custom_call.1} parent=0 // pred_check
    _
  $region39: #{tpu_custom_call.1} parent=0 // pred_check_branch
    %35 = sbr.rel (0) target = $region41
  $region40: #{tpu_custom_call.1} parent=0 // pred_region
    _
  $region41: #{tpu_custom_call.1} parent=0 // pred_fallthru
    _
  // Predicated region
  $region42: #{tpu_custom_call.1} parent=0 // pred_check
    _
  $region43: #{tpu_custom_call.1} parent=0 // pred_check_branch
    %37 = sbr.rel (0) target = $region45
  $region44: #{tpu_custom_call.1} parent=0 // pred_region
    _
  $region45: #{tpu_custom_call.1} parent=0 // pred_fallthru
    _
  %v39 = vld [vmem:[%s0] sm:$0xff]
  %v40 = vld [vmem:[%s0 + $0x8] sm:$0xff]
  %v41 = vld [vmem:[%s0 + $0x10] sm:$0xff]
  %v42 = vld [vmem:[%s0 + $0x18] sm:$0xff]
  %v43 = vld [vmem:[%s1] sm:$0xff]
  %v44 = vld [vmem:[%s1 + $0x8] sm:$0xff]
  %v45 = vld [vmem:[%s1 + $0x10] sm:$0xff]
  %v46 = vld [vmem:[%s1 + $0x18] sm:$0xff]
  %v47 = vpack.c.bf16 %v40, %v39
  %v48 = vpack.c.bf16 %v42, %v41
  %v49 = vld [vmem:[%s2] sm:$0xf]
  %v50 = vld [vmem:[%s2 + $0x4] sm:$0xf]
  %v51 = vpack.c.bf16 %v44, %v43
  %v52 = vpack.c.bf16 %v46, %v45
  %v53 = vld [vmem:[%s3] sm:$0xf]
  %vm54 = vcmask 64512
  %v56 = vsel %vm54, %v51, 0
  %v59 = vsel %vm54, %v52, 0
  %vm61 = vcmask 1043456
  %v63 = vsel %vm61, %v53, 0
  %65 = vmatprep.subr.bf16.mxu0 0
  %66 = vmatpush1.bf16.msra.mxu0 %v63
  %67 = vmatprep.subr.bf16.mxu0 0
  %68 = vmatpush1.bf16.msra.mxu0 0
  %69 = vmatprep.subr.bf16.mxu0 0
  %70 = vmatpush1.bf16.msra.mxu0 0
  %71 = vmatprep.subr.bf16.mxu0 0
  %72 = vmatpush1.bf16.msra.mxu0 0
  %73 = vmatprep.subr.bf16.mxu0 0
  %74 = vmatpush1.bf16.msra.mxu0 0
  %75 = vmatprep.subr.bf16.mxu0 0
  %76 = vmatpush1.bf16.msra.mxu0 0
  %77 = vmatprep.subr.bf16.mxu0 0
  %78 = vmatpush1.bf16.msra.mxu0 0
  %79 = vmatprep.subr.bf16.mxu0 0
  %80 = vmatpush1.bf16.msra.mxu0 0
  %81 = vmatprep.subr.bf16.mxu0 0
  %82 = vmatpush1.bf16.msra.mxu0 0
  %83 = vmatprep.subr.bf16.mxu0 0
  %84 = vmatpush1.bf16.msra.mxu0 0
  %85 = vmatprep.subr.bf16.mxu0 0
  %86 = vmatpush1.bf16.msra.mxu0 0
  %87 = vmatprep.subr.bf16.mxu0 0
  %88 = vmatpush1.bf16.msra.mxu0 0
  %89 = vmatprep.subr.bf16.mxu0 0
  %90 = vmatpush1.bf16.msra.mxu0 0
  %91 = vmatprep.subr.bf16.mxu0 0
  %92 = vmatpush1.bf16.msra.mxu0 0
  %93 = vmatprep.subr.bf16.mxu0 0
  %94 = vmatpush1.bf16.msra.mxu0 0
  %95 = vmatprep.subr.bf16.mxu0 0
  %96 = vmatpush1.bf16.msra.mxu0 0
  %97 = vmatprep.mubr.bf16.mxu0 0
  %98 = vmatmul.mubr.bf16.gmra.mrb[0].mxu0 %v56
  %v99 = vpop.f32.mrb[0].mxu0
  %v100 = vadd.f32 0.0, %v99
  %v101 = vpop.f32.mrb[0].mxu0
  %v102 = vpop.f32.mrb[0].mxu0
  %v103 = vadd.f32 0.0, %v102
  %v104 = vpop.f32.mrb[0].mxu0
  %105 = vmatprep.mubr.bf16.mxu0 0
  %106 = vmatmul.mubr.bf16.gmra.mrb[0].mxu0 %v59
  %v107 = vpop.f32.mrb[0].mxu0
  %v108 = vadd.f32 0.0, %v107
  %v109 = vpop.f32.mrb[0].mxu0
  %v110 = vpop.f32.mrb[0].mxu0
  %v111 = vadd.f32 0.0, %v110
  %v112 = vpop.f32.mrb[0].mxu0
  %113 = vdwg.mxu0
  %v116 = vunpack.c.l.b16 %v49
  %v117 = vunpack.c.l.b16 %v50
  %v118 = vpack.c.b16 %v117, %v116
  %vm120 = vcmask 130048
  %v122 = vsel %vm120, %v47, 0
  %v125 = vsel %vm120, %v48, 0
  %127 = vmatprep.subr.bf16.mxu0 0
  %128 = vmatpush1.bf16.msra.mxu0 %v118
  %129 = vmatprep.subr.bf16.mxu0 0
  %130 = vmatpush1.bf16.msra.mxu0 0
  %131 = vmatprep.subr.bf16.mxu0 0
  %132 = vmatpush1.bf16.msra.mxu0 0
  %133 = vmatprep.subr.bf16.mxu0 0
  %134 = vmatpush1.bf16.msra.mxu0 0
  %135 = vmatprep.subr.bf16.mxu0 0
  %136 = vmatpush1.bf16.msra.mxu0 0
  %137 = vmatprep.subr.bf16.mxu0 0
  %138 = vmatpush1.bf16.msra.mxu0 0
  %139 = vmatprep.subr.bf16.mxu0 0
  %140 = vmatpush1.bf16.msra.mxu0 0
  %141 = vmatprep.subr.bf16.mxu0 0
  %142 = vmatpush1.bf16.msra.mxu0 0
  %143 = vmatprep.subr.bf16.mxu0 0
  %144 = vmatpush1.bf16.msra.mxu0 0
  %145 = vmatprep.subr.bf16.mxu0 0
  %146 = vmatpush1.bf16.msra.mxu0 0
  %147 = vmatprep.subr.bf16.mxu0 0
  %148 = vmatpush1.bf16.msra.mxu0 0
  %149 = vmatprep.subr.bf16.mxu0 0
  %150 = vmatpush1.bf16.msra.mxu0 0
  %151 = vmatprep.subr.bf16.mxu0 0
  %152 = vmatpush1.bf16.msra.mxu0 0
  %153 = vmatprep.subr.bf16.mxu0 0
  %154 = vmatpush1.bf16.msra.mxu0 0
  %155 = vmatprep.subr.bf16.mxu0 0
  %156 = vmatpush1.bf16.msra.mxu0 0
  %157 = vmatprep.subr.bf16.mxu0 0
  %158 = vmatpush1.bf16.msra.mxu0 0
  %159 = vmatprep.mubr.bf16.mxu0 0
  %160 = vmatmul.mubr.bf16.gmra.mrb[0].mxu0 %v122
  %v161 = vpop.f32.mrb[0].mxu0
  %v162 = vadd.f32 %v100, %v161
  %v163 = vpop.f32.mrb[0].mxu0
  %v164 = vpop.f32.mrb[0].mxu0
  %v165 = vadd.f32 %v103, %v164
  %v166 = vpop.f32.mrb[0].mxu0
  %167 = vmatprep.mubr.bf16.mxu0 0
  %168 = vmatmul.mubr.bf16.gmra.mrb[0].mxu0 %v125
  %v169 = vpop.f32.mrb[0].mxu0
  %v170 = vadd.f32 %v108, %v169
  %v171 = vpop.f32.mrb[0].mxu0
  %v172 = vpop.f32.mrb[0].mxu0
  %v173 = vadd.f32 %v111, %v172
  %v174 = vpop.f32.mrb[0].mxu0
  %175 = vdwg.mxu0
  %v176 = vld [vmem:[%s4] sm:$0x1]
  %v178 = vlaneseq
  %v179 = vshrl.u32 %v178, 7
  %v180 = vsub.s32 0, %v179
  %v181 = vrot.slane %v176, %v180
  %v183 = vadd.f32 %v162, %v181
  %v184 = vadd.f32 %v165, %v181
  %v185 = vadd.f32 %v170, %v181
  %v186 = vadd.f32 %v173, %v181
  %v187 = vmax.f32 %v183, 0.0
  %v188 = vmax.f32 %v184, 0.0
  %v189 = vmax.f32 %v185, 0.0
  %v190 = vmax.f32 %v186, 0.0
  %v191 = vpack.c.bf16 %v188, %v187
  %v192 = vpack.c.bf16 %v190, %v189
  %v193 = vld [vmem:[%s5] sm:$0xf]
  %v194 = vld [vmem:[%s5 + $0x4] sm:$0xf]
  %v195 = vld [vmem:[%s5 + $0x8] sm:$0xf]
  %v196 = vld [vmem:[%s5 + $0xc] sm:$0xf]
  %v197 = vld [vmem:[%s6] sm:$0x1]
  %v199 = vlaneseq
  %v200 = vshrl.u32 %v199, 7
  %v201 = vsub.s32 0, %v200
  %v202 = vrot.slane %v197, %v201
  %v208 = vunpack.c.l.b16 %v193
  %v209 = vunpack.c.l.b16 %v194
  %v210 = vunpack.c.l.b16 %v195
  %v211 = vunpack.c.l.b16 %v196
  %v212 = vpack.c.b16 %v209, %v208
  %v213 = vpack.c.b16 %v211, %v210
  %vm216 = vcmask 261120
  %v218 = vsel %vm216, %v191, 0
  %v221 = vsel %vm216, %v192, 0
  %223 = vmatprep.subr.bf16.mxu0 0
  %224 = vmatpush1.bf16.msra.mxu0 %v212
  %225 = vmatprep.subr.bf16.mxu0 0
  %226 = vmatpush1.bf16.msra.mxu0 %v213
  %227 = vmatprep.subr.bf16.mxu0 0
  %228 = vmatpush1.bf16.msra.mxu0 0
  %229 = vmatprep.subr.bf16.mxu0 0
  %230 = vmatpush1.bf16.msra.mxu0 0
  %231 = vmatprep.subr.bf16.mxu0 0
  %232 = vmatpush1.bf16.msra.mxu0 0
  %233 = vmatprep.subr.bf16.mxu0 0
  %234 = vmatpush1.bf16.msra.mxu0 0
  %235 = vmatprep.subr.bf16.mxu0 0
  %236 = vmatpush1.bf16.msra.mxu0 0
  %237 = vmatprep.subr.bf16.mxu0 0
  %238 = vmatpush1.bf16.msra.mxu0 0
  %239 = vmatprep.subr.bf16.mxu0 0
  %240 = vmatpush1.bf16.msra.mxu0 0
  %241 = vmatprep.subr.bf16.mxu0 0
  %242 = vmatpush1.bf16.msra.mxu0 0
  %243 = vmatprep.subr.bf16.mxu0 0
  %244 = vmatpush1.bf16.msra.mxu0 0
  %245 = vmatprep.subr.bf16.mxu0 0
  %246 = vmatpush1.bf16.msra.mxu0 0
  %247 = vmatprep.subr.bf16.mxu0 0
  %248 = vmatpush1.bf16.msra.mxu0 0
  %249 = vmatprep.subr.bf16.mxu0 0
  %250 = vmatpush1.bf16.msra.mxu0 0
  %251 = vmatprep.subr.bf16.mxu0 0
  %252 = vmatpush1.bf16.msra.mxu0 0
  %253 = vmatprep.subr.bf16.mxu0 0
  %254 = vmatpush1.bf16.msra.mxu0 0
  %255 = vmatprep.mubr.bf16.mxu0 0
  %256 = vmatmul.mubr.bf16.gmra.mrb[0].mxu0 %v218
  %v257 = vpop.f32.mrb[0].mxu0
  %v258 = vadd.f32 %v202, %v257
  %v259 = vpop.f32.mrb[0].mxu0
  %v260 = vpop.f32.mrb[0].mxu0
  %v261 = vadd.f32 %v202, %v260
  %v262 = vpop.f32.mrb[0].mxu0
  %263 = vmatprep.mubr.bf16.mxu0 0
  %264 = vmatmul.mubr.bf16.gmra.mrb[0].mxu0 %v221
  %v265 = vpop.f32.mrb[0].mxu0
  %v266 = vadd.f32 %v202, %v265
  %v267 = vpop.f32.mrb[0].mxu0
  %v268 = vpop.f32.mrb[0].mxu0
  %v269 = vadd.f32 %v202, %v268
  %v270 = vpop.f32.mrb[0].mxu0
  %271 = vdwg.mxu0
  %v272 = vmax.f32 %v258, 0.0
  %v273 = vmax.f32 %v261, 0.0
  %v274 = vmax.f32 %v266, 0.0
  %v275 = vmax.f32 %v269, 0.0
  %v276 = vpack.c.bf16 %v273, %v272
  %v277 = vpack.c.bf16 %v275, %v274
  %v278 = vld [vmem:[%s7] sm:$0xf]
  %v279 = vld [vmem:[%s7 + $0x4] sm:$0xf]
  %v280 = vld [vmem:[%s7 + $0x8] sm:$0xf]
  %v281 = vld [vmem:[%s7 + $0xc] sm:$0xf]
  %v282 = vld [vmem:[%s8] sm:$0x1]
  %v284 = vlaneseq
  %v285 = vshrl.u32 %v284, 7
  %v286 = vsub.s32 0, %v285
  %v287 = vrot.slane %v282, %v286
  %v293 = vunpack.c.l.b16 %v278
  %v294 = vunpack.c.l.b16 %v279
  %v295 = vunpack.c.l.b16 %v280
  %v296 = vunpack.c.l.b16 %v281
  %v297 = vpack.c.b16 %v294, %v293
  %v298 = vpack.c.b16 %v296, %v295
  %v302 = vsel %vm216, %v276, 0
  %v305 = vsel %vm216, %v277, 0
  %307 = vmatprep.subr.bf16.mxu0 0
  %308 = vmatpush1.bf16.msra.mxu0 %v297
  %309 = vmatprep.subr.bf16.mxu0 0
  %310 = vmatpush1.bf16.msra.mxu0 %v298
  %311 = vmatprep.subr.bf16.mxu0 0
  %312 = vmatpush1.bf16.msra.mxu0 0
  %313 = vmatprep.subr.bf16.mxu0 0
  %314 = vmatpush1.bf16.msra.mxu0 0
  %315 = vmatprep.subr.bf16.mxu0 0
  %316 = vmatpush1.bf16.msra.mxu0 0
  %317 = vmatprep.subr.bf16.mxu0 0
  %318 = vmatpush1.bf16.msra.mxu0 0
  %319 = vmatprep.subr.bf16.mxu0 0
  %320 = vmatpush1.bf16.msra.mxu0 0
  %321 = vmatprep.subr.bf16.mxu0 0
  %322 = vmatpush1.bf16.msra.mxu0 0
  %323 = vmatprep.subr.bf16.mxu0 0
  %324 = vmatpush1.bf16.msra.mxu0 0
  %325 = vmatprep.subr.bf16.mxu0 0
  %326 = vmatpush1.bf16.msra.mxu0 0
  %327 = vmatprep.subr.bf16.mxu0 0
  %328 = vmatpush1.bf16.msra.mxu0 0
  %329 = vmatprep.subr.bf16.mxu0 0
  %330 = vmatpush1.bf16.msra.mxu0 0
  %331 = vmatprep.subr.bf16.mxu0 0
  %332 = vmatpush1.bf16.msra.mxu0 0
  %333 = vmatprep.subr.bf16.mxu0 0
  %334 = vmatpush1.bf16.msra.mxu0 0
  %335 = vmatprep.subr.bf16.mxu0 0
  %336 = vmatpush1.bf16.msra.mxu0 0
  %337 = vmatprep.subr.bf16.mxu0 0
  %338 = vmatpush1.bf16.msra.mxu0 0
  %339 = vmatprep.mubr.bf16.mxu0 0
  %340 = vmatmul.mubr.bf16.gmra.mrb[0].mxu0 %v302
  %v341 = vpop.f32.mrb[0].mxu0
  %v342 = vadd.f32 %v287, %v341
  %v343 = vpop.f32.mrb[0].mxu0
  %v344 = vpop.f32.mrb[0].mxu0
  %v345 = vadd.f32 %v287, %v344
  %v346 = vpop.f32.mrb[0].mxu0
  %347 = vmatprep.mubr.bf16.mxu0 0
  %348 = vmatmul.mubr.bf16.gmra.mrb[0].mxu0 %v305
  %v349 = vpop.f32.mrb[0].mxu0
  %v350 = vadd.f32 %v287, %v349
  %v351 = vpop.f32.mrb[0].mxu0
  %v352 = vpop.f32.mrb[0].mxu0
  %v353 = vadd.f32 %v287, %v352
  %v354 = vpop.f32.mrb[0].mxu0
  %355 = vdwg.mxu0
  %v356 = vmax.f32 %v342, 0.0
  %v357 = vmax.f32 %v345, 0.0
  %v358 = vmax.f32 %v350, 0.0
  %v359 = vmax.f32 %v353, 0.0
  %v360 = vpack.c.bf16 %v357, %v356
  %v361 = vpack.c.bf16 %v359, %v358
  %v362 = vld [vmem:[%s9] sm:$0xf]
  %v363 = vld [vmem:[%s9 + $0x4] sm:$0xf]
  %v364 = vld [vmem:[%s9 + $0x8] sm:$0xf]
  %v365 = vld [vmem:[%s9 + $0xc] sm:$0xf]
  %v366 = vld [vmem:[%s10] sm:$0x1]
  %v368 = vlaneseq
  %v369 = vshrl.u32 %v368, 7
  %v370 = vsub.s32 0, %v369
  %v371 = vrot.slane %v366, %v370
  %v377 = vunpack.c.l.b16 %v362
  %v378 = vunpack.c.l.b16 %v363
  %v379 = vunpack.c.l.b16 %v364
  %v380 = vunpack.c.l.b16 %v365
  %v381 = vpack.c.b16 %v378, %v377
  %v382 = vpack.c.b16 %v380, %v379
  %v386 = vsel %vm216, %v360, 0
  %v389 = vsel %vm216, %v361, 0
  %391 = vmatprep.subr.bf16.mxu0 0
  %392 = vmatpush1.bf16.msra.mxu0 %v381
  %393 = vmatprep.subr.bf16.mxu0 0
  %394 = vmatpush1.bf16.msra.mxu0 %v382
  %395 = vmatprep.subr.bf16.mxu0 0
  %396 = vmatpush1.bf16.msra.mxu0 0
  %397 = vmatprep.subr.bf16.mxu0 0
  %398 = vmatpush1.bf16.msra.mxu0 0
  %399 = vmatprep.subr.bf16.mxu0 0
  %400 = vmatpush1.bf16.msra.mxu0 0
  %401 = vmatprep.subr.bf16.mxu0 0
  %402 = vmatpush1.bf16.msra.mxu0 0
  %403 = vmatprep.subr.bf16.mxu0 0
  %404 = vmatpush1.bf16.msra.mxu0 0
  %405 = vmatprep.subr.bf16.mxu0 0
  %406 = vmatpush1.bf16.msra.mxu0 0
  %407 = vmatprep.subr.bf16.mxu0 0
  %408 = vmatpush1.bf16.msra.mxu0 0
  %409 = vmatprep.subr.bf16.mxu0 0
  %410 = vmatpush1.bf16.msra.mxu0 0
  %411 = vmatprep.subr.bf16.mxu0 0
  %412 = vmatpush1.bf16.msra.mxu0 0
  %413 = vmatprep.subr.bf16.mxu0 0
  %414 = vmatpush1.bf16.msra.mxu0 0
  %415 = vmatprep.subr.bf16.mxu0 0
  %416 = vmatpush1.bf16.msra.mxu0 0
  %417 = vmatprep.subr.bf16.mxu0 0
  %418 = vmatpush1.bf16.msra.mxu0 0
  %419 = vmatprep.subr.bf16.mxu0 0
  %420 = vmatpush1.bf16.msra.mxu0 0
  %421 = vmatprep.subr.bf16.mxu0 0
  %422 = vmatpush1.bf16.msra.mxu0 0
  %423 = vmatprep.mubr.bf16.mxu0 0
  %424 = vmatmul.mubr.bf16.gmra.mrb[0].mxu0 %v386
  %v425 = vpop.f32.mrb[0].mxu0
  %v426 = vadd.f32 %v371, %v425
  %v427 = vpop.f32.mrb[0].mxu0
  %v428 = vpop.f32.mrb[0].mxu0
  %v429 = vadd.f32 %v371, %v428
  %v430 = vpop.f32.mrb[0].mxu0
  %431 = vmatprep.mubr.bf16.mxu0 0
  %432 = vmatmul.mubr.bf16.gmra.mrb[0].mxu0 %v389
  %v433 = vpop.f32.mrb[0].mxu0
  %v434 = vadd.f32 %v371, %v433
  %v435 = vpop.f32.mrb[0].mxu0
  %v436 = vpop.f32.mrb[0].mxu0
  %v437 = vadd.f32 %v371, %v436
  %v438 = vpop.f32.mrb[0].mxu0
  %439 = vdwg.mxu0
  %v440 = vadd.f32 %v426, %v39
  %v441 = vadd.f32 %v429, %v40
  %v442 = vadd.f32 %v434, %v41
  %v443 = vadd.f32 %v437, %v42
  %444 = vst.msk [vmem:[%s11] sm:$0xff] %vm120, %v440
  %445 = vst.msk [vmem:[%s11 + $0x8] sm:$0xff] %vm120, %v441
  %446 = vst.msk [vmem:[%s11 + $0x10] sm:$0xff] %vm120, %v442
  %447 = vst.msk [vmem:[%s11 + $0x18] sm:$0xff] %vm120, %v443
  // Predicated region
  $region46: #{tpu_custom_call.1} parent=0 // pred_check
    _
  $region47: #{tpu_custom_call.1} parent=0 // pred_check_branch
    %449 = sbr.rel (0) target = $region49
  $region48: #{tpu_custom_call.1} parent=0 // pred_region
    _
  $region49: #{tpu_custom_call.1} parent=0 // pred_fallthru
    _
  // Predicated region
  $region50: #{tpu_custom_call.1} parent=0 // pred_check
    _
  $region51: #{tpu_custom_call.1} parent=0 // pred_check_branch
    %451 = sbr.rel (0) target = $region53
  $region52: #{tpu_custom_call.1} parent=0 // pred_region
    _
  $region53: #{tpu_custom_call.1} parent=0 // pred_fallthru
    _

</llo_original>
